<compile_context>
chip_gen: v7x
topology: tpu7x:2x2x1
jax: 0.10.0
libtpu: 0.0.40
codegen_flags: <defaults>
</compile_context>

<pallas_src>
import functools

import jax
import jax.numpy as jnp
from jax.experimental import pallas as pl
from jax.experimental.pallas import tpu as pltpu


# Packed-parameter layout (single 2-D array, width W = max(E, 4D)):
#   rows 0..7   : small-parameter slab (rows below)
#   rows 8..8+E : U_d^T  (E, E) in columns [:E]
_ROW_BIAS = 0    # wd_b + ud_b                       (E,)
_ROW_VDW = 1     # v_d weight row                    (E,)
_ROW_WTWC = 2    # w_tilde weight, context part      (E,)
_ROW_WIH = 3     # LSTM W_ih column (input size 1)   (4D,)
_ROW_BLSTM = 4   # bih + bhh                         (4D,)
_ROW_SCAL = 5    # [v_d bias, w_tilde y-coeff, w_tilde bias, 0...]
_ROW_UD = 8      # start of U_d^T block


# ----------------------------------------------------------------------------
# Pallas kernel: attention + softmax + context + w_tilde + one LSTM cell step.
# Fully VMEM-resident, single grid point, 2-D data throughout.
# ----------------------------------------------------------------------------
def decoder_kernel(h_flat_ref, y0_ref, params_ref, d_out_ref, c_out_ref):
    h_flat = h_flat_ref[...]                               # (B*S, E) f32
    y0 = y0_ref[...]                                       # (B, 1)   f32
    B, D = d_out_ref.shape
    E = c_out_ref.shape[1]
    S = h_flat.shape[0] // B
    G = 4 * D

    # One load for every small parameter row; static value slices are free.
    slab = params_ref[0:8, :]                              # (8, W)
    ud_t = params_ref[_ROW_UD:_ROW_UD + E, :E]             # (E, E) = U_d^T

    bias = slab[_ROW_BIAS:_ROW_BIAS + 1, :E]               # (1, E) wd_b + ud_b
    vd_w = slab[_ROW_VDW:_ROW_VDW + 1, :E]                 # (1, E)
    wt_wc = slab[_ROW_WTWC:_ROW_WTWC + 1, :E]              # (1, E)
    wih = slab[_ROW_WIH:_ROW_WIH + 1, :G]                  # (1, 4D)
    b_lstm = slab[_ROW_BLSTM:_ROW_BLSTM + 1, :G]           # (1, 4D)
    vd_b = slab[_ROW_SCAL:_ROW_SCAL + 1, 0:1]              # (1, 1)
    wt_wy = slab[_ROW_SCAL:_ROW_SCAL + 1, 1:2]             # (1, 1)
    wt_b = slab[_ROW_SCAL:_ROW_SCAL + 1, 2:3]              # (1, 1)

    # U_d applied to every encoder state: one 2-D MXU pass (operand already
    # flattened by the wrapper; no in-kernel reshape / relayout).
    u_h = jnp.dot(h_flat, ud_t, preferred_element_type=jnp.float32)  # (B*S, E)

    # W_d(cat([d_t, s_t])) with zero state reduces to its bias (folded in).
    re1 = jnp.tanh(u_h + bias)                             # (B*S, E)

    # v_d projection (N=1): VPU broadcast-multiply + lane reduce.
    logits = jnp.sum(re1 * vd_w, axis=-1, keepdims=True) + vd_b      # (B*S, 1)

    # Per-batch softmax over the sequence + context vector.  B is tiny and
    # static, so a Python unroll with static sublane slices avoids any
    # (B*S, ...) <-> (B, S, ...) relayout.  Exact divide for the denominator.
    c_rows = []
    for b in range(B):
        l_b = logits[b * S:(b + 1) * S, :]                 # (S, 1)
        m = jnp.max(l_b, axis=0, keepdims=True)            # (1, 1)
        p = jnp.exp(l_b - m)                               # (S, 1)
        beta = p / jnp.sum(p, axis=0, keepdims=True)       # (S, 1)
        h_b = h_flat[b * S:(b + 1) * S, :]                 # (S, E)
        c_rows.append(jnp.sum(beta * h_b, axis=0, keepdims=True))    # (1, E)
    c_t = jnp.concatenate(c_rows, axis=0)                  # (B, E)

    # w_tilde(cat([c_t, y_0])): context-row dot (VPU) + scalar y part.
    y_tilde = (jnp.sum(c_t * wt_wc, axis=-1, keepdims=True)
               + y0 * wt_wy + wt_b)                        # (B, 1)

    # One LSTM cell step from zero (h, c): h_prev@W_hh and f*c_prev vanish.
    gates = y_tilde * wih + b_lstm                         # (B, 4D)  i|f|g|o
    i_g = jax.nn.sigmoid(gates[:, 0:D])
    g_g = jnp.tanh(gates[:, 2 * D:3 * D])
    o_g = jax.nn.sigmoid(gates[:, 3 * D:4 * D])
    h_new = o_g * jnp.tanh(i_g * g_g)                      # (B, D)

    # Two direct stores (no lane-axis concatenate, no post-kernel slices).
    d_out_ref[...] = h_new.astype(d_out_ref.dtype)
    c_out_ref[...] = c_t.astype(c_out_ref.dtype)


# ----------------------------------------------------------------------------
# One-time host-side parameter repacking into a single 2-D array (keeps the
# per-call path free of transposes / slices and cuts the param DMAs to one).
# ----------------------------------------------------------------------------
def pack_params(params):
    E = params["ud_w"].shape[0]
    D = params["whh"].shape[1]
    G = 4 * D
    W = max(E, G)
    packed = jnp.zeros((_ROW_UD + E, W), jnp.float32)
    packed = packed.at[_ROW_BIAS, :E].set(params["wd_b"] + params["ud_b"])
    packed = packed.at[_ROW_VDW, :E].set(params["vd_w"][0])
    packed = packed.at[_ROW_WTWC, :E].set(params["wt_w"][0, :E])
    packed = packed.at[_ROW_WIH, :G].set(params["wih"][:, 0])
    packed = packed.at[_ROW_BLSTM, :G].set(params["bih"] + params["bhh"])
    packed = packed.at[_ROW_SCAL, 0].set(params["vd_b"][0])
    packed = packed.at[_ROW_SCAL, 1].set(params["wt_w"][0, E])
    packed = packed.at[_ROW_SCAL, 2].set(params["wt_b"][0])
    packed = packed.at[_ROW_UD:_ROW_UD + E, :E].set(params["ud_w"].T)
    return {"packed": packed, "hidden_dim_decoder": D}


@functools.partial(jax.jit, static_argnames=("hidden_dim_decoder",))
def decoder_forward(y, h_t_enc, packed_params, *, hidden_dim_decoder):
    B, S, E = h_t_enc.shape
    D = hidden_dim_decoder
    h_flat = h_t_enc.reshape(B * S, E)    # contiguous reshape: free in XLA
    y0 = y[:, 0, :]                       # only y[:, 0] is ever read
    vmem = pl.BlockSpec(memory_space=pltpu.MemorySpace.VMEM)
    d_t, c_t = pl.pallas_call(
        decoder_kernel,
        out_shape=(jax.ShapeDtypeStruct((B, D), jnp.float32),
                   jax.ShapeDtypeStruct((B, E), jnp.float32)),
        in_specs=[vmem, vmem, vmem],
        out_specs=(vmem, vmem),
    )(h_flat, y0, packed_params)
    return d_t, c_t


# ----------------------------------------------------------------------------
# Pure-JAX reference (mirrors the PyTorch forward, raw params) for checking.
# ----------------------------------------------------------------------------
def decoder_reference(y, h_t_enc, params):
    B, S, E = h_t_enc.shape
    D = params["whh"].shape[1]
    ds = jnp.zeros((B, 2 * D), jnp.float32)
    wd_ds = ds @ params["wd_w"].T + params["wd_b"]
    u_h = h_t_enc @ params["ud_w"].T + params["ud_b"]
    re1 = jnp.tanh(wd_ds[:, None, :] + u_h)
    l = (re1 @ params["vd_w"].T)[..., 0] + params["vd_b"]
    beta = jax.nn.softmax(l, axis=1)
    c_t = jnp.sum(beta[:, :, None] * h_t_enc, axis=1)
    y0 = y[:, 0]
    y_tilde = jnp.concatenate([c_t, y0], axis=1) @ params["wt_w"].T + params["wt_b"]
    gates = (y_tilde @ params["wih"].T + params["bih"]
             + jnp.zeros((B, D)) @ params["whh"].T + params["bhh"])
    i_g = jax.nn.sigmoid(gates[:, :D])
    f_g = jax.nn.sigmoid(gates[:, D:2 * D])
    g_g = jnp.tanh(gates[:, 2 * D:3 * D])
    o_g = jax.nn.sigmoid(gates[:, 3 * D:4 * D])
    c_new = f_g * jnp.zeros((B, D)) + i_g * g_g
    h_new = o_g * jnp.tanh(c_new)
    return h_new, c_t


def init_params(key, hidden_dim_decoder, hidden_dim_encoder):
    D, E = hidden_dim_decoder, hidden_dim_encoder
    ks = jax.random.split(key, 12)
    scale = 0.1
    return {
        "wd_w": scale * jax.random.normal(ks[0], (E, 2 * D), jnp.float32),
        "wd_b": scale * jax.random.normal(ks[1], (E,), jnp.float32),
        "ud_w": scale * jax.random.normal(ks[2], (E, E), jnp.float32),
        "ud_b": scale * jax.random.normal(ks[3], (E,), jnp.float32),
        "vd_w": scale * jax.random.normal(ks[4], (1, E), jnp.float32),
        "vd_b": scale * jax.random.normal(ks[5], (1,), jnp.float32),
        "wt_w": scale * jax.random.normal(ks[6], (1, E + 1), jnp.float32),
        "wt_b": scale * jax.random.normal(ks[7], (1,), jnp.float32),
        "wih": scale * jax.random.normal(ks[8], (4 * D, 1), jnp.float32),
        "whh": scale * jax.random.normal(ks[9], (4 * D, D), jnp.float32),
        "bih": scale * jax.random.normal(ks[10], (4 * D,), jnp.float32),
        "bhh": scale * jax.random.normal(ks[11], (4 * D,), jnp.float32),
    }


if __name__ == "__main__":
    batch = 2
    hidden_dim_decoder = 32
    hidden_dim_encoder = 32
    seq_len = 8

    key = jax.random.PRNGKey(0)
    k_y, k_h, k_p = jax.random.split(key, 3)
    y = jax.random.normal(k_y, (batch, seq_len, 1), jnp.float32)
    h_t_enc = jax.random.normal(k_h, (batch, seq_len, hidden_dim_encoder),
                                jnp.float32)
    params = init_params(k_p, hidden_dim_decoder, hidden_dim_encoder)

    packed = pack_params(params)   # one-time repack, outside the hot path
    d_out, c_out = decoder_forward(
        y, h_t_enc, packed["packed"],
        hidden_dim_decoder=packed["hidden_dim_decoder"])
    jax.block_until_ready((d_out, c_out))

    d_ref, c_ref = decoder_reference(y, h_t_enc, params)
    assert d_out.shape == (batch, hidden_dim_decoder)
    assert c_out.shape == (batch, hidden_dim_encoder)
    assert jnp.allclose(d_out, d_ref, atol=1e-5, rtol=1e-5), "d_t mismatch"
    assert jnp.allclose(c_out, c_ref, atol=1e-5, rtol=1e-5), "c_t mismatch"

    print("KERNEL_OK")
</pallas_src>

<mosaic_0001>
module attributes {stable_mosaic.version = 11 : i64} {
  func.func @decoder_kernel(%arg0: memref<16x32xf32, #tpu.memory_space<vmem>>, %arg1: memref<2x1xf32, #tpu.memory_space<vmem>>, %arg2: memref<40x128xf32, #tpu.memory_space<vmem>>, %arg3: memref<2x32xf32, #tpu.memory_space<vmem>>, %arg4: memref<2x32xf32, #tpu.memory_space<vmem>>) attributes {dimension_semantics = [], scalar_prefetch = 0 : i64, scratch_operands = 0 : i64, tpu.core_type = #tpu.core_type<tc>} {
    %c0 = arith.constant 0 : index
    %c0_0 = arith.constant 0 : index
    %0 = vector.load %arg0[%c0, %c0_0] : memref<16x32xf32, #tpu.memory_space<vmem>>, vector<16x32xf32>
    %c0_1 = arith.constant 0 : index
    %c0_2 = arith.constant 0 : index
    %1 = vector.load %arg1[%c0_1, %c0_2] : memref<2x1xf32, #tpu.memory_space<vmem>>, vector<2x1xf32>
    %c0_3 = arith.constant 0 : index
    %c0_4 = arith.constant 0 : index
    %2 = vector.load %arg2[%c0_3, %c0_4] : memref<40x128xf32, #tpu.memory_space<vmem>>, vector<8x128xf32>
    %c8 = arith.constant 8 : index
    %c0_5 = arith.constant 0 : index
    %3 = vector.load %arg2[%c8, %c0_5] : memref<40x128xf32, #tpu.memory_space<vmem>>, vector<32x32xf32>
    %4 = vector.extract_strided_slice %2 {offsets = [0, 0], sizes = [1, 32], strides = [1, 1]} : vector<8x128xf32> to vector<1x32xf32>
    %5 = vector.extract_strided_slice %2 {offsets = [1, 0], sizes = [1, 32], strides = [1, 1]} : vector<8x128xf32> to vector<1x32xf32>
    %6 = vector.extract_strided_slice %2 {offsets = [2, 0], sizes = [1, 32], strides = [1, 1]} : vector<8x128xf32> to vector<1x32xf32>
    %7 = vector.extract_strided_slice %2 {offsets = [3, 0], sizes = [1, 128], strides = [1, 1]} : vector<8x128xf32> to vector<1x128xf32>
    %8 = vector.extract_strided_slice %2 {offsets = [4, 0], sizes = [1, 128], strides = [1, 1]} : vector<8x128xf32> to vector<1x128xf32>
    %9 = vector.extract_strided_slice %2 {offsets = [5, 0], sizes = [1, 1], strides = [1, 1]} : vector<8x128xf32> to vector<1x1xf32>
    %10 = vector.extract_strided_slice %2 {offsets = [5, 1], sizes = [1, 1], strides = [1, 1]} : vector<8x128xf32> to vector<1x1xf32>
    %11 = vector.extract_strided_slice %2 {offsets = [5, 2], sizes = [1, 1], strides = [1, 1]} : vector<8x128xf32> to vector<1x1xf32>
    %cst = arith.constant dense<0.000000e+00> : vector<16x32xf32>
    %12 = tpu.matmul %0, %3, %cst {dimension_numbers = #tpu.dot_dimension_numbers<[1], [0], [0], [1], [0, 0, 1, 1], [], []>} : vector<16x32xf32>, vector<32x32xf32>, vector<16x32xf32> -> vector<16x32xf32>
    %13 = vector.broadcast %4 : vector<1x32xf32> to vector<16x32xf32>
    %14 = arith.addf %12, %13 : vector<16x32xf32>
    %15 = math.tanh %14 : vector<16x32xf32>
    %16 = vector.broadcast %5 : vector<1x32xf32> to vector<16x32xf32>
    %17 = arith.mulf %15, %16 : vector<16x32xf32>
    %cst_6 = arith.constant dense<0.000000e+00> : vector<16xf32>
    %18 = vector.multi_reduction <add>, %17, %cst_6 [1] : vector<16x32xf32> to vector<16xf32>
    %19 = vector.shape_cast %18 : vector<16xf32> to vector<16x1xf32>
    %20 = vector.broadcast %9 : vector<1x1xf32> to vector<16x1xf32>
    %21 = arith.addf %19, %20 : vector<16x1xf32>
    %22 = vector.extract_strided_slice %21 {offsets = [0, 0], sizes = [8, 1], strides = [1, 1]} : vector<16x1xf32> to vector<8x1xf32>
    %cst_7 = arith.constant dense<0xFF800000> : vector<1xf32>
    %23 = vector.multi_reduction <maximumf>, %22, %cst_7 [0] : vector<8x1xf32> to vector<1xf32>
    %24 = vector.shape_cast %23 : vector<1xf32> to vector<1x1xf32>
    %25 = vector.broadcast %24 : vector<1x1xf32> to vector<8x1xf32>
    %26 = arith.subf %22, %25 : vector<8x1xf32>
    %27 = math.exp %26 : vector<8x1xf32>
    %cst_8 = arith.constant dense<0.000000e+00> : vector<1xf32>
    %28 = vector.multi_reduction <add>, %27, %cst_8 [0] : vector<8x1xf32> to vector<1xf32>
    %29 = vector.shape_cast %28 : vector<1xf32> to vector<1x1xf32>
    %30 = vector.broadcast %29 : vector<1x1xf32> to vector<8x1xf32>
    %31 = arith.divf %27, %30 : vector<8x1xf32>
    %32 = vector.extract_strided_slice %0 {offsets = [0, 0], sizes = [8, 32], strides = [1, 1]} : vector<16x32xf32> to vector<8x32xf32>
    %33 = vector.broadcast %31 : vector<8x1xf32> to vector<8x32xf32>
    %34 = arith.mulf %33, %32 : vector<8x32xf32>
    %cst_9 = arith.constant dense<0.000000e+00> : vector<32xf32>
    %35 = vector.multi_reduction <add>, %34, %cst_9 [0] : vector<8x32xf32> to vector<32xf32>
    %36 = vector.shape_cast %35 : vector<32xf32> to vector<1x32xf32>
    %37 = vector.extract_strided_slice %21 {offsets = [8, 0], sizes = [8, 1], strides = [1, 1]} : vector<16x1xf32> to vector<8x1xf32>
    %cst_10 = arith.constant dense<0xFF800000> : vector<1xf32>
    %38 = vector.multi_reduction <maximumf>, %37, %cst_10 [0] : vector<8x1xf32> to vector<1xf32>
    %39 = vector.shape_cast %38 : vector<1xf32> to vector<1x1xf32>
    %40 = vector.broadcast %39 : vector<1x1xf32> to vector<8x1xf32>
    %41 = arith.subf %37, %40 : vector<8x1xf32>
    %42 = math.exp %41 : vector<8x1xf32>
    %cst_11 = arith.constant dense<0.000000e+00> : vector<1xf32>
    %43 = vector.multi_reduction <add>, %42, %cst_11 [0] : vector<8x1xf32> to vector<1xf32>
    %44 = vector.shape_cast %43 : vector<1xf32> to vector<1x1xf32>
    %45 = vector.broadcast %44 : vector<1x1xf32> to vector<8x1xf32>
    %46 = arith.divf %42, %45 : vector<8x1xf32>
    %47 = vector.extract_strided_slice %0 {offsets = [8, 0], sizes = [8, 32], strides = [1, 1]} : vector<16x32xf32> to vector<8x32xf32>
    %48 = vector.broadcast %46 : vector<8x1xf32> to vector<8x32xf32>
    %49 = arith.mulf %48, %47 : vector<8x32xf32>
    %cst_12 = arith.constant dense<0.000000e+00> : vector<32xf32>
    %50 = vector.multi_reduction <add>, %49, %cst_12 [0] : vector<8x32xf32> to vector<32xf32>
    %51 = vector.shape_cast %50 : vector<32xf32> to vector<1x32xf32>
    %52 = tpu.concatenate %36, %51 in 0 : vector<1x32xf32>, vector<1x32xf32> -> vector<2x32xf32>
    %53 = vector.broadcast %6 : vector<1x32xf32> to vector<2x32xf32>
    %54 = arith.mulf %52, %53 : vector<2x32xf32>
    %cst_13 = arith.constant dense<0.000000e+00> : vector<2xf32>
    %55 = vector.multi_reduction <add>, %54, %cst_13 [1] : vector<2x32xf32> to vector<2xf32>
    %56 = vector.shape_cast %55 : vector<2xf32> to vector<2x1xf32>
    %57 = vector.broadcast %10 : vector<1x1xf32> to vector<2x1xf32>
    %58 = arith.mulf %1, %57 : vector<2x1xf32>
    %59 = arith.addf %56, %58 : vector<2x1xf32>
    %60 = vector.broadcast %11 : vector<1x1xf32> to vector<2x1xf32>
    %61 = arith.addf %59, %60 : vector<2x1xf32>
    %62 = vector.broadcast %61 : vector<2x1xf32> to vector<2x128xf32>
    %63 = vector.broadcast %7 : vector<1x128xf32> to vector<2x128xf32>
    %64 = arith.mulf %62, %63 : vector<2x128xf32>
    %65 = vector.broadcast %8 : vector<1x128xf32> to vector<2x128xf32>
    %66 = arith.addf %64, %65 : vector<2x128xf32>
    %67 = vector.extract_strided_slice %66 {offsets = [0, 0], sizes = [2, 32], strides = [1, 1]} : vector<2x128xf32> to vector<2x32xf32>
    %68 = arith.negf %67 : vector<2x32xf32>
    %69 = math.exp %68 : vector<2x32xf32>
    %cst_14 = arith.constant 1.000000e+00 : f32
    %70 = vector.broadcast %cst_14 : f32 to vector<2x32xf32>
    %71 = arith.addf %70, %69 : vector<2x32xf32>
    %72 = arith.divf %70, %71 : vector<2x32xf32>
    %73 = vector.extract_strided_slice %66 {offsets = [0, 64], sizes = [2, 32], strides = [1, 1]} : vector<2x128xf32> to vector<2x32xf32>
    %74 = math.tanh %73 : vector<2x32xf32>
    %75 = vector.extract_strided_slice %66 {offsets = [0, 96], sizes = [2, 32], strides = [1, 1]} : vector<2x128xf32> to vector<2x32xf32>
    %76 = arith.negf %75 : vector<2x32xf32>
    %77 = math.exp %76 : vector<2x32xf32>
    %cst_15 = arith.constant 1.000000e+00 : f32
    %78 = vector.broadcast %cst_15 : f32 to vector<2x32xf32>
    %79 = arith.addf %78, %77 : vector<2x32xf32>
    %80 = arith.divf %78, %79 : vector<2x32xf32>
    %81 = arith.mulf %72, %74 : vector<2x32xf32>
    %82 = math.tanh %81 : vector<2x32xf32>
    %83 = arith.mulf %80, %82 : vector<2x32xf32>
    %c0_16 = arith.constant 0 : index
    %c0_17 = arith.constant 0 : index
    %84 = vector.load %arg3[%c0_16, %c0_17] : memref<2x32xf32, #tpu.memory_space<vmem>>, vector<2x32xf32>
    tpu.vector_store %arg3[%c0_16, %c0_17], %83 {strides = array<i32>} : memref<2x32xf32, #tpu.memory_space<vmem>>, vector<2x32xf32>,
    %c0_18 = arith.constant 0 : index
    %c0_19 = arith.constant 0 : index
    %85 = vector.load %arg4[%c0_18, %c0_19] : memref<2x32xf32, #tpu.memory_space<vmem>>, vector<2x32xf32>
    tpu.vector_store %arg4[%c0_18, %c0_19], %52 {strides = array<i32>} : memref<2x32xf32, #tpu.memory_space<vmem>>, vector<2x32xf32>,
    return
  }
}

</mosaic_0001>

<llo_original>
// kernel: decoder_forward.1
$region0: #{decoder_forward.1}
  #allocation0 [shape = 'u32[]', space=smem, size = 0x4, offset = 0x4, fixed_abs, tag = 'smem constant byte address 0x4 - core index']
  #allocation1 [shape = 'u32[144,128]{1,0:T(1,128)}', space=vmem, size = 0x12000, scoped, tag = 'internal scratch']
  %s0 = inlined_call_operand.hbm [shape: f32[16,32], index: 0, kind: input, shape index: {}]
  %s1 = inlined_call_operand.vmem [shape: f32[2,1], index: 1, kind: input, shape index: {}]
  %s2 = inlined_call_operand.hbm [shape: f32[40,128], index: 2, kind: input, shape index: {}]
  %s3 = inlined_call_operand.hbm [shape: f32[2,32], index: 3, kind: output, shape index: {0}]
  %s4 = inlined_call_operand.hbm [shape: f32[2,32], index: 4, kind: output, shape index: {1}]
  %5 = xla_tuple %s3, %s4
  %s6 = sld [smem:[#allocation0]]
  $region38: #{decoder_forward.1} parent=0
    _
  %s8 = ssub.s32 1, %s6
  %s9 = scalar_select 0, %s8, %s6
  $region1: #{decoder_forward.1} parent=0
    #allocation2 [shape = 'u8[8192]{0}', space=vmem, size = 0x2000, scoped, tag = 'input window, operand 0, single buffered']
    #allocation3 [shape = 's32[1]{0}', space=sflag, size = 0x4, scoped, tag = 'scoped memory for decoder_forward.1']
    #allocation4 [shape = 's32[1]{0}', space=sflag, size = 0x4, scoped, tag = 'scoped memory for decoder_forward.1']
    #allocation5 [shape = 'u8[20480]{0}', space=vmem, size = 0x5000, scoped, tag = 'input window, operand 2, single buffered']
    #allocation6 [shape = 's32[1]{0}', space=sflag, size = 0x4, scoped, tag = 'scoped memory for decoder_forward.1']
    #allocation7 [shape = 'u8[1024]{0}', space=vmem, size = 0x400, scoped, tag = 'output window, operand 0, single buffered']
    #allocation8 [shape = 'u8[1024]{0}', space=vmem, size = 0x400, scoped, tag = 'output window, operand 1, single buffered']
    #allocation9 [shape = 's32[1]{0}', space=sflag, size = 0x4, scoped, tag = 'scoped memory for decoder_forward.1']
    %10 = vsyncpa [#allocation3], 0
    %11 = vsyncpa [#allocation6], 0
    %12 = vsyncpa [#allocation4], 0
    %13 = vsyncpa [#allocation9], 0
    // Predicated region
    $region2: #{decoder_forward.1} parent=1 // pred_check
      _
    $region3: #{decoder_forward.1} parent=1 // pred_check_branch
      %15 = sbr.rel (0) target = $region5
    $region4: #{decoder_forward.1} parent=1 // pred_region
      %s17 = ssub.s32 256, 256
      %18 = vsyncadd [#allocation3], %s17
      %s19 = sshll.u32 [#allocation2], 4
      %s20 = int_to_ptr.vmem [resolvable:$true] %s19
      %25 = dma.hbm_to_vmem [thread:$0]  %s0, 256, %s20, [#allocation3], 128, 128, 8
    $region5: #{decoder_forward.1} parent=1 // pred_fallthru
      _
    // Predicated region
    $region6: #{decoder_forward.1} parent=1 // pred_check
      _
    $region7: #{decoder_forward.1} parent=1 // pred_check_branch
      %27 = sbr.rel (0) target = $region9
    $region8: #{decoder_forward.1} parent=1 // pred_region
      _
    $region9: #{decoder_forward.1} parent=1 // pred_fallthru
      _
    // Predicated region
    $region10: #{decoder_forward.1} parent=1 // pred_check
      _
    $region11: #{decoder_forward.1} parent=1 // pred_check_branch
      %29 = sbr.rel (0) target = $region13
    $region12: #{decoder_forward.1} parent=1 // pred_region
      %s31 = ssub.s32 640, 640
      %32 = vsyncadd [#allocation6], %s31
      %s33 = sshll.u32 [#allocation5], 4
      %s34 = int_to_ptr.vmem [resolvable:$true] %s33
      %39 = dma.hbm_to_vmem [thread:$0]  %s2, 640, %s34, [#allocation6], 128, 128, 8
    $region13: #{decoder_forward.1} parent=1 // pred_fallthru
      _
    // Predicated region
    $region14: #{decoder_forward.1} parent=1 // pred_check
      _
    $region15: #{decoder_forward.1} parent=1 // pred_check_branch
      %41 = sbr.rel (0) target = $region17
    $region16: #{decoder_forward.1} parent=1 // pred_region
      %42 = dma.done [#allocation3], 256
    $region17: #{decoder_forward.1} parent=1 // pred_fallthru
      _
    // Predicated region
    $region18: #{decoder_forward.1} parent=1 // pred_check
      _
    $region19: #{decoder_forward.1} parent=1 // pred_check_branch
      %44 = sbr.rel (0) target = $region21
    $region20: #{decoder_forward.1} parent=1 // pred_region
      %45 = dma.done [#allocation6], 640
    $region21: #{decoder_forward.1} parent=1 // pred_fallthru
      _
    %v46 = vld [vmem:[#allocation2] sm:$0xff]
    %v47 = vld [vmem:[#allocation2 + $0x8] sm:$0xff]
    %v48 = vld [vmem:[%s1] sm:$0x3]
    %v49 = vld [vmem:[#allocation5] sm:$0xff]
    %v50 = vld [vmem:[#allocation5 + $0x8] sm:$0xff]
    %v51 = vld [vmem:[#allocation5 + $0x10] sm:$0xff]
    %v52 = vld [vmem:[#allocation5 + $0x18] sm:$0xff]
    %v53 = vld [vmem:[#allocation5 + $0x20] sm:$0xff]
    %v54 = vlaneseq
    %v55 = vshrl.u32 %v54, 7
    %v56 = vsub.s32 0, %v55
    %v57 = vrot.slane %v49, %v56
    %vm58 = vcmask 261120
    %v60 = vsel %vm58, %v46, 0
    %v63 = vsel %vm58, %v47, 0
    %65 = vmatprep.subr.mxu0 0.0
    %66 = vmatpush1.msra.mxu0 %v50
    %67 = vmatprep.subr.mxu0 0.0
    %68 = vmatpush1.msra.mxu0 %v51
    %69 = vmatprep.subr.mxu0 0.0
    %70 = vmatpush1.msra.mxu0 %v52
    %71 = vmatprep.subr.mxu0 0.0
    %72 = vmatpush1.msra.mxu0 %v53
    %73 = vmatprep.subr.mxu0 0.0
    %74 = vmatpush1.msra.mxu0 0.0
    %75 = vmatprep.subr.mxu0 0.0
    %76 = vmatpush1.msra.mxu0 0.0
    %77 = vmatprep.subr.mxu0 0.0
    %78 = vmatpush1.msra.mxu0 0.0
    %79 = vmatprep.subr.mxu0 0.0
    %80 = vmatpush1.msra.mxu0 0.0
    %81 = vmatprep.subr.mxu0 0.0
    %82 = vmatpush1.msra.mxu0 0.0
    %83 = vmatprep.subr.mxu0 0.0
    %84 = vmatpush1.msra.mxu0 0.0
    %85 = vmatprep.subr.mxu0 0.0
    %86 = vmatpush1.msra.mxu0 0.0
    %87 = vmatprep.subr.mxu0 0.0
    %88 = vmatpush1.msra.mxu0 0.0
    %89 = vmatprep.subr.mxu0 0.0
    %90 = vmatpush1.msra.mxu0 0.0
    %91 = vmatprep.subr.mxu0 0.0
    %92 = vmatpush1.msra.mxu0 0.0
    %93 = vmatprep.subr.mxu0 0.0
    %94 = vmatpush1.msra.mxu0 0.0
    %95 = vmatprep.subr.mxu0 0.0
    %96 = vmatpush1.msra.mxu0 0.0
    %97 = vmatprep.subr.mxu0 0.0
    %98 = vmatpush1.msra.mxu0 0.0
    %99 = vmatprep.subr.mxu0 0.0
    %100 = vmatpush1.msra.mxu0 0.0
    %101 = vmatprep.subr.mxu0 0.0
    %102 = vmatpush1.msra.mxu0 0.0
    %103 = vmatprep.subr.mxu0 0.0
    %104 = vmatpush1.msra.mxu0 0.0
    %105 = vmatprep.subr.mxu0 0.0
    %106 = vmatpush1.msra.mxu0 0.0
    %107 = vmatprep.subr.mxu0 0.0
    %108 = vmatpush1.msra.mxu0 0.0
    %109 = vmatprep.subr.mxu0 0.0
    %110 = vmatpush1.msra.mxu0 0.0
    %111 = vmatprep.subr.mxu0 0.0
    %112 = vmatpush1.msra.mxu0 0.0
    %113 = vmatprep.subr.mxu0 0.0
    %114 = vmatpush1.msra.mxu0 0.0
    %115 = vmatprep.subr.mxu0 0.0
    %116 = vmatpush1.msra.mxu0 0.0
    %117 = vmatprep.subr.mxu0 0.0
    %118 = vmatpush1.msra.mxu0 0.0
    %119 = vmatprep.subr.mxu0 0.0
    %120 = vmatpush1.msra.mxu0 0.0
    %121 = vmatprep.subr.mxu0 0.0
    %122 = vmatpush1.msra.mxu0 0.0
    %123 = vmatprep.subr.mxu0 0.0
    %124 = vmatpush1.msra.mxu0 0.0
    %125 = vmatprep.subr.mxu0 0.0
    %126 = vmatpush1.msra.mxu0 0.0
    %127 = vmatprep.subr.mxu0 0.0
    %128 = vmatpush1.msra.mxu0 0.0
    %129 = vmatprep.mubr.f32.mxu0 0.0
    %130 = vmatmul.mubr.f32.gmra.mrb[0].mxu0 %v60
    %v131 = vpop.f32.mrb[0].mxu0
    %v132 = vadd.f32 %v57, %v131
    %v133 = vpop.f32.mrb[0].mxu0
    %134 = vmatprep.mubr.f32.mxu0 0.0
    %135 = vmatmul.mubr.f32.gmra.mrb[0].mxu0 %v63
    %v136 = vpop.f32.mrb[0].mxu0
    %v137 = vadd.f32 %v57, %v136
    %v138 = vpop.f32.mrb[0].mxu0
    %139 = vdwg.mxu0
    %v140 = vtanh.pop %v132
    %v141 = vtanh.pop %v137
    %v142 = vlaneseq
    %v143 = vshrl.u32 %v142, 7
    %v144 = vsub.s32 1, %v143
    %v145 = vrot.slane %v49, %v144
    %v146 = vmul.f32 %v140, %v145
    %v147 = vmul.f32 %v141, %v145
    %v148 = vsel %vm58, %v146, 0.0
    %149 = vadd.xlane.f32.xlu0 %v148
    %v150 = vpop.xlane.xlu0 %149
    %v151 = vsel %vm58, %v147, 0.0
    %152 = vadd.xlane.f32.xlu0 %v151
    %v153 = vpop.xlane.xlu0 %152
    %v154 = vlaneseq
    %v155 = vshrl.u32 %v154, 7
    %v156 = vsub.s32 5, %v155
    %v157 = vrot.slane %v49, %v156
    %v158 = vadd.f32 %v150, %v157
    %v159 = vadd.f32 %v153, %v157
    %vm160 = vcmask 7168
    %v161 = vsel %vm160, %v158, -inf
    %v162 = vrot.slane %v161, 4
    %v163 = vmax.f32 %v161, %v162
    %v164 = vrot.slane %v163, 2
    %v165 = vmax.f32 %v163, %v164
    %v166 = vrot.slane %v165, 1
    %v167 = vmax.f32 %v165, %v166
    %v168 = vsub.f32 %v158, %v167
    %v169 = vmul.f32 %v168, 1.442695
    %v170 = vpow.pop %v169
    %v171 = vsel %vm160, %v170, 0.0
    %v172 = vrot.slane %v171, 4
    %v173 = vadd.f32 %v171, %v172
    %v174 = vrot.slane %v173, 2
    %v175 = vadd.f32 %v173, %v174
    %v176 = vrot.slane %v175, 1
    %v177 = vadd.f32 %v175, %v176
    %v178 = vrcp.pop %v177
    %v179 = vmul.f32 %v170, %v178
    %181 = vset.pattern.permute.xlu0 0
    %182 = vperm.xlu0 %181, %v179
    %v183 = vpop.permute.xlu0 %182
    %v185 = vmul.f32 %v183, %v46
    %v186 = vsel %vm58, %v185, 0.0
    %v187 = vrot.slane %v186, 4
    %v188 = vadd.f32 %v186, %v187
    %v189 = vrot.slane %v188, 2
    %v190 = vadd.f32 %v188, %v189
    %v191 = vrot.slane %v190, 1
    %v192 = vadd.f32 %v190, %v191
    %v193 = vsel %vm160, %v159, -inf
    %v194 = vrot.slane %v193, 4
    %v195 = vmax.f32 %v193, %v194
    %v196 = vrot.slane %v195, 2
    %v197 = vmax.f32 %v195, %v196
    %v198 = vrot.slane %v197, 1
    %v199 = vmax.f32 %v197, %v198
    %v200 = vsub.f32 %v159, %v199
    %v201 = vmul.f32 %v200, 1.442695
    %v202 = vpow.pop %v201
    %v203 = vsel %vm160, %v202, 0.0
    %v204 = vrot.slane %v203, 4
    %v205 = vadd.f32 %v203, %v204
    %v206 = vrot.slane %v205, 2
    %v207 = vadd.f32 %v205, %v206
    %v208 = vrot.slane %v207, 1
    %v209 = vadd.f32 %v207, %v208
    %v210 = vrcp.pop %v209
    %v211 = vmul.f32 %v202, %v210
    %213 = vset.pattern.permute.xlu0 0
    %214 = vperm.xlu0 %213, %v211
    %v215 = vpop.permute.xlu0 %214
    %v217 = vmul.f32 %v215, %v47
    %v218 = vsel %vm58, %v217, 0.0
    %v219 = vrot.slane %v218, 4
    %v220 = vadd.f32 %v218, %v219
    %v221 = vrot.slane %v220, 2
    %v222 = vadd.f32 %v220, %v221
    %v223 = vrot.slane %v222, 1
    %v224 = vadd.f32 %v222, %v223
    %vm225 = vcmask 1040384
    %v226 = vsel %vm225, %v192, %v224
    %v227 = vlaneseq
    %v228 = vshrl.u32 %v227, 7
    %v229 = vsub.s32 2, %v228
    %v230 = vrot.slane %v49, %v229
    %v231 = vmul.f32 %v226, %v230
    %vm232 = vcmask 254976
    %v233 = vsel %vm232, %v231, 0.0
    %234 = vadd.xlane.f32.xlu0 %v233
    %v235 = vpop.xlane.xlu0 %234
    %237 = vrot.lane.b32.xlu0 %v157, 127
    %v238 = vpop.permute.xlu0 %237
    %v240 = vmul.f32 %v48, %v238
    %v241 = vadd.f32 %v235, %v240
    %242 = vrot.lane.b32.xlu0 %v157, 126
    %v243 = vpop.permute.xlu0 %242
    %v245 = vadd.f32 %v241, %v243
    %247 = vset.pattern.permute.xlu0 0
    %248 = vperm.xlu0 %247, %v245
    %v249 = vpop.permute.xlu0 %248
    %v251 = vlaneseq
    %v252 = vshrl.u32 %v251, 7
    %v253 = vsub.s32 3, %v252
    %v254 = vrot.slane %v49, %v253
    %v255 = vmul.f32 %v249, %v254
    %v256 = vlaneseq
    %v257 = vshrl.u32 %v256, 7
    %v258 = vsub.s32 4, %v257
    %v259 = vrot.slane %v49, %v258
    %v260 = vadd.f32 %v255, %v259
    %v261 = vxor.u32 %v260, 2147483648
    %v262 = vmul.f32 %v261, 1.442695
    %v263 = vpow.pop %v262
    %v264 = vadd.f32 %v263, 1.0
    %v265 = vrcp.pop %v264
    %v266 = vmul.f32 1.0, %v265
    %v267 = vtanh.pop %v260
    %269 = vrot.lane.b32.xlu0 %v267, 64
    %v270 = vpop.permute.xlu0 %269
    %v272 = vmul.f32 %v266, %v270
    %v273 = vtanh.pop %v272
    %275 = vrot.lane.b32.xlu0 %v273, 96
    %v276 = vpop.permute.xlu0 %275
    %v278 = vmul.f32 %v266, %v276
    %280 = vrot.lane.b32.xlu0 %v278, 32
    %v281 = vpop.permute.xlu0 %280
    %283 = vst.msk [vmem:[#allocation7] sm:$0x3] %vm232, %v281
    %284 = vst.msk [vmem:[#allocation8] sm:$0x3] %vm232, %v226
    // Predicated region
    $region22: #{decoder_forward.1} parent=1 // pred_check
      _
    $region23: #{decoder_forward.1} parent=1 // pred_check_branch
      %286 = sbr.rel (0) target = $region25
    $region24: #{decoder_forward.1} parent=1 // pred_region
      %s288 = ssub.s32 32, 32
      %289 = vsyncadd [#allocation4], %s288
      %s291 = sshll.u32 [#allocation7], 4
      %s292 = int_to_ptr.vmem [resolvable:$true] %s291
      %294 = dma.vmem_to_hbm [thread:$0]  %s292, 32, %s3, [#allocation4]
    $region25: #{decoder_forward.1} parent=1 // pred_fallthru
      _
    // Predicated region
    $region26: #{decoder_forward.1} parent=1 // pred_check
      _
    $region27: #{decoder_forward.1} parent=1 // pred_check_branch
      %296 = sbr.rel (0) target = $region29
    $region28: #{decoder_forward.1} parent=1 // pred_region
      %s298 = ssub.s32 32, 32
      %299 = vsyncadd [#allocation9], %s298
      %s301 = sshll.u32 [#allocation8], 4
      %s302 = int_to_ptr.vmem [resolvable:$true] %s301
      %304 = dma.vmem_to_hbm [thread:$0]  %s302, 32, %s4, [#allocation9]
    $region29: #{decoder_forward.1} parent=1 // pred_fallthru
      _
    // Predicated region
    $region30: #{decoder_forward.1} parent=1 // pred_check
      _
    $region31: #{decoder_forward.1} parent=1 // pred_check_branch
      %306 = sbr.rel (0) target = $region33
    $region32: #{decoder_forward.1} parent=1 // pred_region
      %307 = dma.done [#allocation4], 32
    $region33: #{decoder_forward.1} parent=1 // pred_fallthru
      _
    // Predicated region
    $region34: #{decoder_forward.1} parent=1 // pred_check
      _
    $region35: #{decoder_forward.1} parent=1 // pred_check_branch
      %309 = sbr.rel (0) target = $region37
    $region36: #{decoder_forward.1} parent=1 // pred_region
      %310 = dma.done [#allocation9], 32
    $region37: #{decoder_forward.1} parent=1 // pred_fallthru
      _
    %311 = vsyncpa [#allocation3], 1
    %312 = vsyncpa [#allocation6], 1
    %313 = vsyncpa [#allocation4], 1
    %314 = vsyncpa [#allocation9], 1

</llo_original>
